<compile_context>
chip_gen: v5e
topology: v5e:2x2
jax: 0.10.0
libtpu: 0.0.40
codegen_flags: <defaults>
</compile_context>

<pallas_src>
import jax
import jax.numpy as jnp
from jax.experimental import pallas as pl
from jax.experimental.pallas import tpu as pltpu


def _round_up(x, m):
    return ((x + m - 1) // m) * m


def _actor_kernel(x_ref, w1_ref, b1_ref, w2d_ref, b2d_ref, emb_ref, probs_ref):
    # Stroke embedding stand-in: (TM, F) @ (F, 128) + b1 -> ReLU -> (TM, 128).
    h = jnp.dot(x_ref[...], w1_ref[...], preferred_element_type=jnp.float32)
    h = jnp.maximum(h + b1_ref[...], 0.0)
    emb_ref[...] = h

    # 128 -> 2 selector head via signed-difference weights (built in wrapper):
    #   d[:, 0] = l0 - l1,  d[:, 1] = l1 - l0  (exact negation of d[:, 0]),
    # so the 2-class softmax is a pure elementwise sigmoid of d:
    #   softmax([l0, l1])[c] = 1 / (1 + exp(-(l_c - l_other)))
    # No lane-axis max/sum, no slicing/concat, no dead lanes: the result is
    # exactly the 2 useful columns, written straight to a (TM, 2) block.
    d = jnp.dot(h, w2d_ref[...], preferred_element_type=jnp.float32) + b2d_ref[...]
    probs_ref[...] = 1.0 / (1.0 + jnp.exp(-d))  # exact divide; rows sum to 1 +- ulp


def sketch_actor_forward(stroke_feats, w1, b1, w2, b2, *, row_tile=2048):
    """Returns (categorical_probs (N, 2), output_x (N, 128))."""
    n, f = stroke_feats.shape
    f_in, hidden = w1.shape
    assert f_in == f
    n_classes = w2.shape[1]
    assert n_classes == 2, "stroke_selector_fc is nn.Linear(128, 2)"

    # Rows per grid step: multiple of 8, at most row_tile, and small enough to
    # yield >= ~4 grid steps so ("parallel",) can use both TensorCores on v7x.
    tm = min(row_tile, max(8, _round_up(-(-n // 4), 8)))
    grid = (pl.cdiv(n, tm),)

    # Signed-difference head folded in the wrapper (O(hidden) work, negligible):
    #   col0 = w2[:,0] - w2[:,1], col1 = -col0; bias difference likewise.
    w2f = w2.astype(jnp.float32)
    b2f = b2.reshape(-1).astype(jnp.float32)
    dcol = w2f[:, 0] - w2f[:, 1]
    w2d = jnp.stack([dcol, -dcol], axis=1)          # (hidden, 2)
    db = b2f[0] - b2f[1]
    b2d = jnp.stack([db, -db]).reshape(1, 2)        # (1, 2)

    x = stroke_feats.astype(jnp.float32)            # passed unpadded: (N, F)
    w1f = w1.astype(jnp.float32)
    b1f = b1.reshape(1, hidden).astype(jnp.float32)

    grid_spec = pltpu.PrefetchScalarGridSpec(
        num_scalar_prefetch=0,
        grid=grid,
        in_specs=[
            # Only N-scaling read; last block dim == full array dim (legal).
            pl.BlockSpec((tm, f), lambda i: (i, 0)),
            # Constant-index weight blocks: resident in VMEM across grid steps.
            pl.BlockSpec((f, hidden), lambda i: (0, 0)),
            pl.BlockSpec((1, hidden), lambda i: (0, 0)),
            pl.BlockSpec((hidden, 2), lambda i: (0, 0)),
            pl.BlockSpec((1, 2), lambda i: (0, 0)),
        ],
        out_specs=[
            pl.BlockSpec((tm, hidden), lambda i: (i, 0)),   # output_x embeddings
            pl.BlockSpec((tm, 2), lambda i: (i, 0)),        # 2-lane probs (no pad)
        ],
    )

    emb, probs = pl.pallas_call(
        _actor_kernel,
        out_shape=(
            jax.ShapeDtypeStruct((n, hidden), jnp.float32),
            jax.ShapeDtypeStruct((n, 2), jnp.float32),
        ),
        grid_spec=grid_spec,
        compiler_params=pltpu.CompilerParams(
            dimension_semantics=("parallel",),
        ),
    )(x, w1f, b1f, w2d, b2d)

    return probs, emb


def _init_linear(key, fan_in, fan_out):
    """Deterministic init mimicking nn.Linear's uniform(-1/sqrt(fan_in), ...)."""
    kw, kb = jax.random.split(key)
    bound = 1.0 / jnp.sqrt(jnp.float32(fan_in))
    w = jax.random.uniform(kw, (fan_in, fan_out), jnp.float32, -bound, bound)
    b = jax.random.uniform(kb, (1, fan_out), jnp.float32, -bound, bound)
    return w, b


if __name__ == "__main__":
    key = jax.random.PRNGKey(0)
    k_x, k_emb, k_fc = jax.random.split(key, 3)

    # Small synthetic shapes: 10 strokes total (e.g. 2 sketches with 6 and 4
    # strokes), 32 raw features per stroke, 128-d embedding, 2 classes.
    # N=10 with tm=8 exercises the ragged last-block path (grid of 2 steps).
    N_STROKES, FEAT, HIDDEN, CLASSES = 10, 32, 128, 2

    stroke_feats = jax.random.normal(k_x, (N_STROKES, FEAT), jnp.float32)
    w1, b1 = _init_linear(k_emb, FEAT, HIDDEN)     # stroke embedding stand-in
    w2, b2 = _init_linear(k_fc, HIDDEN, CLASSES)   # stroke_selector_fc (128 -> 2)

    # Per-sketch stroke counts (metadata, not kernel compute).
    num_stroke_x = jnp.array([6, 4], dtype=jnp.int32)

    probs, output_x = sketch_actor_forward(stroke_feats, w1, b1, w2, b2)
    jax.block_until_ready((probs, output_x))

    # Reference check in plain JAX.
    h_ref = jnp.maximum(stroke_feats @ w1 + b1, 0.0)
    logits_ref = h_ref @ w2 + b2
    probs_ref = jax.nn.softmax(logits_ref, axis=1)

    assert probs.shape == (N_STROKES, CLASSES)
    assert output_x.shape == (N_STROKES, HIDDEN)
    assert jnp.allclose(output_x, h_ref, atol=1e-5, rtol=1e-5)
    # Probs use the mathematically-equivalent sigmoid(l_c - l_other) form with
    # the weight difference folded in the wrapper; tolerance covers the small
    # accumulation-order rounding difference vs. the explicit softmax.
    assert jnp.allclose(probs, probs_ref, atol=1e-4, rtol=1e-4)
    assert jnp.allclose(jnp.sum(probs, axis=1), 1.0, atol=1e-5)

    # (Categorical dist is represented by `probs`; num_stroke_x passed through.)
    print("KERNEL_OK")
</pallas_src>

<mosaic_0001>
module attributes {stable_mosaic.version = 11 : i64} {
  func.func @_actor_kernel(%arg0: i32, %arg1: memref<8x32xf32, #tpu.memory_space<vmem>>, %arg2: memref<32x128xf32, #tpu.memory_space<vmem>>, %arg3: memref<1x128xf32, #tpu.memory_space<vmem>>, %arg4: memref<128x2xf32, #tpu.memory_space<vmem>>, %arg5: memref<1x2xf32, #tpu.memory_space<vmem>>, %arg6: memref<8x128xf32, #tpu.memory_space<vmem>>, %arg7: memref<8x2xf32, #tpu.memory_space<vmem>>) attributes {dimension_semantics = [#tpu.dimension_semantics<parallel>], iteration_bounds = array<i64: 2>, scalar_prefetch = 0 : i64, scratch_operands = 0 : i64, tpu.core_type = #tpu.core_type<tc>, window_params = [{transform_indices = @transform_0, window_bounds = array<i64: 8, 32>}, {pipeline_mode = #tpu.pipeline_mode<synchronous>, transform_indices = @transform_1, window_bounds = array<i64: 32, 128>}, {pipeline_mode = #tpu.pipeline_mode<synchronous>, transform_indices = @transform_2, window_bounds = array<i64: 1, 128>}, {pipeline_mode = #tpu.pipeline_mode<synchronous>, transform_indices = @transform_3, window_bounds = array<i64: 128, 2>}, {pipeline_mode = #tpu.pipeline_mode<synchronous>, transform_indices = @transform_4, window_bounds = array<i64: 1, 2>}, {transform_indices = @transform_5, window_bounds = array<i64: 8, 128>}, {transform_indices = @transform_6, window_bounds = array<i64: 8, 2>}]} {
    %c0 = arith.constant 0 : index
    %c0_0 = arith.constant 0 : index
    %0 = vector.load %arg1[%c0, %c0_0] : memref<8x32xf32, #tpu.memory_space<vmem>>, vector<8x32xf32>
    %c0_1 = arith.constant 0 : index
    %c0_2 = arith.constant 0 : index
    %1 = vector.load %arg2[%c0_1, %c0_2] : memref<32x128xf32, #tpu.memory_space<vmem>>, vector<32x128xf32>
    %cst = arith.constant dense<0.000000e+00> : vector<8x128xf32>
    %2 = tpu.matmul %0, %1, %cst {dimension_numbers = #tpu.dot_dimension_numbers<[1], [0], [0], [1], [0, 0, 1, 1], [], []>} : vector<8x32xf32>, vector<32x128xf32>, vector<8x128xf32> -> vector<8x128xf32>
    %c0_3 = arith.constant 0 : index
    %c0_4 = arith.constant 0 : index
    %3 = vector.load %arg3[%c0_3, %c0_4] : memref<1x128xf32, #tpu.memory_space<vmem>>, vector<1x128xf32>
    %4 = vector.broadcast %3 : vector<1x128xf32> to vector<8x128xf32>
    %5 = arith.addf %2, %4 : vector<8x128xf32>
    %cst_5 = arith.constant 0.000000e+00 : f32
    %6 = vector.broadcast %cst_5 : f32 to vector<8x128xf32>
    %7 = arith.maximumf %5, %6 : vector<8x128xf32>
    %c0_6 = arith.constant 0 : index
    %c0_7 = arith.constant 0 : index
    %8 = vector.load %arg6[%c0_6, %c0_7] : memref<8x128xf32, #tpu.memory_space<vmem>>, vector<8x128xf32>
    tpu.vector_store %arg6[%c0_6, %c0_7], %7 {strides = array<i32>} : memref<8x128xf32, #tpu.memory_space<vmem>>, vector<8x128xf32>,
    %c0_8 = arith.constant 0 : index
    %c0_9 = arith.constant 0 : index
    %9 = vector.load %arg4[%c0_8, %c0_9] : memref<128x2xf32, #tpu.memory_space<vmem>>, vector<128x2xf32>
    %cst_10 = arith.constant dense<0.000000e+00> : vector<8x2xf32>
    %10 = tpu.matmul %7, %9, %cst_10 {dimension_numbers = #tpu.dot_dimension_numbers<[1], [0], [0], [1], [0, 0, 1, 1], [], []>} : vector<8x128xf32>, vector<128x2xf32>, vector<8x2xf32> -> vector<8x2xf32>
    %c0_11 = arith.constant 0 : index
    %c0_12 = arith.constant 0 : index
    %11 = vector.load %arg5[%c0_11, %c0_12] : memref<1x2xf32, #tpu.memory_space<vmem>>, vector<1x2xf32>
    %12 = vector.broadcast %11 : vector<1x2xf32> to vector<8x2xf32>
    %13 = arith.addf %10, %12 : vector<8x2xf32>
    %cst_13 = arith.constant 0.000000e+00 : f32
    %14 = vector.broadcast %cst_13 : f32 to vector<8x2xf32>
    %15 = arith.subf %14, %13 : vector<8x2xf32>
    %16 = math.exp %15 : vector<8x2xf32>
    %cst_14 = arith.constant 1.000000e+00 : f32
    %17 = vector.broadcast %cst_14 : f32 to vector<8x2xf32>
    %18 = arith.addf %17, %16 : vector<8x2xf32>
    %cst_15 = arith.constant 1.000000e+00 : f32
    %19 = vector.broadcast %cst_15 : f32 to vector<8x2xf32>
    %20 = arith.divf %19, %18 : vector<8x2xf32>
    %c0_16 = arith.constant 0 : index
    %c0_17 = arith.constant 0 : index
    %21 = vector.load %arg7[%c0_16, %c0_17] : memref<8x2xf32, #tpu.memory_space<vmem>>, vector<8x2xf32>
    tpu.vector_store %arg7[%c0_16, %c0_17], %20 {strides = array<i32>} : memref<8x2xf32, #tpu.memory_space<vmem>>, vector<8x2xf32>,
    return
  }
  func.func @transform_0(%arg0: i32) -> (i32, i32) {
    %c0_i32 = arith.constant 0 : i32
    %c0_i32_0 = arith.constant 0 : i32
    return %arg0, %c0_i32 : i32, i32
  }
  func.func @transform_1(%arg0: i32) -> (i32, i32) {
    %c0_i32 = arith.constant 0 : i32
    %c0_i32_0 = arith.constant 0 : i32
    %c0_i32_1 = arith.constant 0 : i32
    return %c0_i32, %c0_i32_0 : i32, i32
  }
  func.func @transform_2(%arg0: i32) -> (i32, i32) {
    %c0_i32 = arith.constant 0 : i32
    %c0_i32_0 = arith.constant 0 : i32
    %c0_i32_1 = arith.constant 0 : i32
    return %c0_i32, %c0_i32_0 : i32, i32
  }
  func.func @transform_3(%arg0: i32) -> (i32, i32) {
    %c0_i32 = arith.constant 0 : i32
    %c0_i32_0 = arith.constant 0 : i32
    %c0_i32_1 = arith.constant 0 : i32
    return %c0_i32, %c0_i32_0 : i32, i32
  }
  func.func @transform_4(%arg0: i32) -> (i32, i32) {
    %c0_i32 = arith.constant 0 : i32
    %c0_i32_0 = arith.constant 0 : i32
    %c0_i32_1 = arith.constant 0 : i32
    return %c0_i32, %c0_i32_0 : i32, i32
  }
  func.func @transform_5(%arg0: i32) -> (i32, i32) {
    %c0_i32 = arith.constant 0 : i32
    %c0_i32_0 = arith.constant 0 : i32
    return %arg0, %c0_i32 : i32, i32
  }
  func.func @transform_6(%arg0: i32) -> (i32, i32) {
    %c0_i32 = arith.constant 0 : i32
    %c0_i32_0 = arith.constant 0 : i32
    return %arg0, %c0_i32 : i32, i32
  }
}

</mosaic_0001>

<llo_original>
// kernel: tpu_custom_call.1
$region0: #{tpu_custom_call.1}
  #allocation0 [shape = 'u32[]', space=smem, size = 0x4, offset = 0x4, fixed_abs, tag = 'smem constant byte address 0x4 - core index']
  #allocation1 [shape = 'u32[72,128]{1,0:T(1,128)}', space=vmem, size = 0x9000, scoped, tag = 'internal scratch']
  %s0 = inlined_call_operand.vmem [shape: f32[10,32], index: 0, kind: input, shape index: {}]
  %s1 = inlined_call_operand.vmem [shape: f32[32,128], index: 1, kind: input, shape index: {}]
  %s2 = inlined_call_operand.vmem [shape: f32[1,128], index: 2, kind: input, shape index: {}]
  %s3 = inlined_call_operand.vmem [shape: f32[128,2], index: 3, kind: input, shape index: {}]
  %s4 = inlined_call_operand.vmem [shape: f32[1,2], index: 4, kind: input, shape index: {}]
  %s5 = inlined_call_operand.hbm [shape: f32[10,128], index: 5, kind: output, shape index: {0}]
  %s6 = inlined_call_operand.vmem [shape: f32[10,2], index: 6, kind: output, shape index: {1}]
  %7 = xla_tuple %s5, %s6
  %s8 = sld [smem:[#allocation0]]
  $region61: #{tpu_custom_call.1} parent=0
    _
  %s10 = ssub.s32 1, %s8
  %s11 = scalar_select 0, %s10, %s8
  $region1: #{tpu_custom_call.1} parent=0
    #allocation2 [shape = 'u8[8192]{0}', space=vmem, size = 0x2000, scoped, tag = 'output window, operand 0']
    #allocation3 [shape = 's32[2]{0}', space=sflag, size = 0x8, scoped, tag = 'scoped memory for tpu_custom_call.1']
    %12 = vsyncpa [#allocation3], 0
    %s13 = scalar_lea.sflag [#allocation3], 1
    %14 = vsyncpa %s13, 0
    loop: start=0, step=1, limit=4
    $region2: #{tpu_custom_call.1} parent=1 // loop_pre_header
      _
    $region3: #{tpu_custom_call.1} parent=1 // loop_header
      %s16 = sphi 0, %s20
      %p17 = scmp.ge.s32.totalorder %s16, 4
      %s26 = sphi 0, %s28
      %s29 = sphi 0, %s26
      %s30 = sphi 0, %s29
      %s46 = sphi 0, %s30
      %s50 = sphi 0, %s50
      %s52 = sphi 0, %s50
      %s53 = sphi 0, %s52
      %s67 = sphi 0, %s53
      %s71 = sphi 0, %s71
      %s73 = sphi 0, %s71
      %s74 = sphi 0, %s73
      %s88 = sphi 0, %s74
      %s92 = sphi 0, %s92
      %s94 = sphi 0, %s92
      %s95 = sphi 0, %s94
      %s109 = sphi 0, %s95
      %s113 = sphi 0, %s113
      %s115 = sphi 0, %s113
      %s116 = sphi 0, %s115
      %s130 = sphi 0, %s116
      %s136 = sphi 0, %s138
      %s139 = sphi 0, %s136
      %s140 = sphi 0, %s139
      %s156 = sphi 0, %s140
      %s162 = sphi 0, %s164
      %s165 = sphi 0, %s162
      %s166 = sphi 0, %s165
      %s182 = sphi 0, %s166
    $region4: #{tpu_custom_call.1} parent=1 // loop_header_branch
      %19 = sbr.rel (%p17) target = $region8
    $region5: #{tpu_custom_call.1} parent=1 // loop_body
      %s21 = ssub.s32 %s16, 1
      %s22 = ssub.s32 %s16, 2
      %s23 = sadd.s32 %s16, 1
      %s24 = ssub.s32 %s16, %s23
      %p25 = scmp.eq.s32.totalorder %s24, 0
      %s27 = sadd.s32 %s26, 1
      %s28 = scalar_select %p25, %s26, %s27
      %p31 = pneg %p25
      %p32 = scmp.eq.s32.totalorder %s16, 1
      %p33 = por %p31, %p32
      %p34 = scmp.ne.s32.totalorder %s26, %s29
      %p35 = scmp.eq.s32.totalorder %s16, 0
      %p36 = por %p34, %p35
      %p37 = scmp.ne.s32.totalorder %s26, %s29
      %p38 = scmp.eq.s32.totalorder %s21, 1
      %p39 = por %p37, %p38
      %p40 = scmp.ne.s32.totalorder %s29, %s30
      %p41 = scmp.eq.s32.totalorder %s21, 0
      %p42 = por %p40, %p41
      %p43 = scmp.ne.s32.totalorder %s29, %s30
      %p44 = scmp.eq.s32.totalorder %s22, 1
      %p45 = por %p43, %p44
      %p47 = scmp.ne.s32.totalorder %s30, %s46
      %p48 = scmp.eq.s32.totalorder %s22, 0
      %p49 = por %p47, %p48
      %s51 = sadd.s32 %s50, 1
      %p54 = scmp.eq.s32.totalorder %s16, 1
      %p55 = scmp.ne.s32.totalorder %s50, %s52
      %p56 = scmp.eq.s32.totalorder %s16, 0
      %p57 = por %p55, %p56
      %p58 = scmp.ne.s32.totalorder %s50, %s52
      %p59 = scmp.eq.s32.totalorder %s21, 1
      %p60 = por %p58, %p59
      %p61 = scmp.ne.s32.totalorder %s52, %s53
      %p62 = scmp.eq.s32.totalorder %s21, 0
      %p63 = por %p61, %p62
      %p64 = scmp.ne.s32.totalorder %s52, %s53
      %p65 = scmp.eq.s32.totalorder %s22, 1
      %p66 = por %p64, %p65
      %p68 = scmp.ne.s32.totalorder %s53, %s67
      %p69 = scmp.eq.s32.totalorder %s22, 0
      %p70 = por %p68, %p69
      %s72 = sadd.s32 %s71, 1
      %p75 = scmp.eq.s32.totalorder %s16, 1
      %p76 = scmp.ne.s32.totalorder %s71, %s73
      %p77 = scmp.eq.s32.totalorder %s16, 0
      %p78 = por %p76, %p77
      %p79 = scmp.ne.s32.totalorder %s71, %s73
      %p80 = scmp.eq.s32.totalorder %s21, 1
      %p81 = por %p79, %p80
      %p82 = scmp.ne.s32.totalorder %s73, %s74
      %p83 = scmp.eq.s32.totalorder %s21, 0
      %p84 = por %p82, %p83
      %p85 = scmp.ne.s32.totalorder %s73, %s74
      %p86 = scmp.eq.s32.totalorder %s22, 1
      %p87 = por %p85, %p86
      %p89 = scmp.ne.s32.totalorder %s74, %s88
      %p90 = scmp.eq.s32.totalorder %s22, 0
      %p91 = por %p89, %p90
      %s93 = sadd.s32 %s92, 1
      %p96 = scmp.eq.s32.totalorder %s16, 1
      %p97 = scmp.ne.s32.totalorder %s92, %s94
      %p98 = scmp.eq.s32.totalorder %s16, 0
      %p99 = por %p97, %p98
      %p100 = scmp.ne.s32.totalorder %s92, %s94
      %p101 = scmp.eq.s32.totalorder %s21, 1
      %p102 = por %p100, %p101
      %p103 = scmp.ne.s32.totalorder %s94, %s95
      %p104 = scmp.eq.s32.totalorder %s21, 0
      %p105 = por %p103, %p104
      %p106 = scmp.ne.s32.totalorder %s94, %s95
      %p107 = scmp.eq.s32.totalorder %s22, 1
      %p108 = por %p106, %p107
      %p110 = scmp.ne.s32.totalorder %s95, %s109
      %p111 = scmp.eq.s32.totalorder %s22, 0
      %p112 = por %p110, %p111
      %s114 = sadd.s32 %s113, 1
      %p117 = scmp.eq.s32.totalorder %s16, 1
      %p118 = scmp.ne.s32.totalorder %s113, %s115
      %p119 = scmp.eq.s32.totalorder %s16, 0
      %p120 = por %p118, %p119
      %p121 = scmp.ne.s32.totalorder %s113, %s115
      %p122 = scmp.eq.s32.totalorder %s21, 1
      %p123 = por %p121, %p122
      %p124 = scmp.ne.s32.totalorder %s115, %s116
      %p125 = scmp.eq.s32.totalorder %s21, 0
      %p126 = por %p124, %p125
      %p127 = scmp.ne.s32.totalorder %s115, %s116
      %p128 = scmp.eq.s32.totalorder %s22, 1
      %p129 = por %p127, %p128
      %p131 = scmp.ne.s32.totalorder %s116, %s130
      %p132 = scmp.eq.s32.totalorder %s22, 0
      %p133 = por %p131, %p132
      %s134 = ssub.s32 %s16, %s23
      %p135 = scmp.eq.s32.totalorder %s134, 0
      %s137 = sadd.s32 %s136, 1
      %s138 = scalar_select %p135, %s136, %s137
      %p141 = pneg %p135
      %p142 = scmp.eq.s32.totalorder %s16, 1
      %p143 = por %p141, %p142
      %p144 = scmp.ne.s32.totalorder %s136, %s139
      %p145 = scmp.eq.s32.totalorder %s16, 0
      %p146 = por %p144, %p145
      %p147 = scmp.ne.s32.totalorder %s136, %s139
      %p148 = scmp.eq.s32.totalorder %s21, 1
      %p149 = por %p147, %p148
      %p150 = scmp.ne.s32.totalorder %s139, %s140
      %p151 = scmp.eq.s32.totalorder %s21, 0
      %p152 = por %p150, %p151
      %p153 = scmp.ne.s32.totalorder %s139, %s140
      %p154 = scmp.eq.s32.totalorder %s22, 1
      %p155 = por %p153, %p154
      %p157 = scmp.ne.s32.totalorder %s140, %s156
      %p158 = scmp.eq.s32.totalorder %s22, 0
      %p159 = por %p157, %p158
      %s160 = ssub.s32 %s16, %s23
      %p161 = scmp.eq.s32.totalorder %s160, 0
      %s163 = sadd.s32 %s162, 1
      %s164 = scalar_select %p161, %s162, %s163
      %p167 = pneg %p161
      %p168 = scmp.eq.s32.totalorder %s16, 1
      %p169 = por %p167, %p168
      %p170 = scmp.ne.s32.totalorder %s162, %s165
      %p171 = scmp.eq.s32.totalorder %s16, 0
      %p172 = por %p170, %p171
      %p173 = scmp.ne.s32.totalorder %s162, %s165
      %p174 = scmp.eq.s32.totalorder %s21, 1
      %p175 = por %p173, %p174
      %p176 = scmp.ne.s32.totalorder %s165, %s166
      %p177 = scmp.eq.s32.totalorder %s21, 0
      %p178 = por %p176, %p177
      %p179 = scmp.ne.s32.totalorder %s165, %s166
      %p180 = scmp.eq.s32.totalorder %s22, 1
      %p181 = por %p179, %p180
      %p183 = scmp.ne.s32.totalorder %s166, %s182
      %p184 = scmp.eq.s32.totalorder %s22, 0
      %p185 = por %p183, %p184
      %p186 = scmp.le.s32.totalorder 1, %s16
      %p187 = scmp.lt.s32.totalorder %s16, 3
      %p188 = pnand %p186, %p187
      %p189 = pneg %p188
      // Predicated region
      $region9: #{tpu_custom_call.1} parent=5 // pred_check
        _
      $region10: #{tpu_custom_call.1} parent=5 // pred_check_branch
        %191 = sbr.rel (%p188) target = $region12
      $region11: #{tpu_custom_call.1} parent=5 // pred_region
        %s192 = ssub.s32 %s16, 1
        // Predicated region
        $region13: #{tpu_custom_call.1} parent=11 // pred_check
          %p193 = pneg %p63
        $region14: #{tpu_custom_call.1} parent=11 // pred_check_branch
          %195 = sbr.rel (%p193) target = $region16
        $region15: #{tpu_custom_call.1} parent=11 // pred_region
          _
        $region16: #{tpu_custom_call.1} parent=11 // pred_fallthru
          _
        // Predicated region
        $region17: #{tpu_custom_call.1} parent=11 // pred_check
          %p196 = pneg %p84
        $region18: #{tpu_custom_call.1} parent=11 // pred_check_branch
          %198 = sbr.rel (%p196) target = $region20
        $region19: #{tpu_custom_call.1} parent=11 // pred_region
          _
        $region20: #{tpu_custom_call.1} parent=11 // pred_fallthru
          _
        // Predicated region
        $region21: #{tpu_custom_call.1} parent=11 // pred_check
          %p199 = pneg %p105
        $region22: #{tpu_custom_call.1} parent=11 // pred_check_branch
          %201 = sbr.rel (%p199) target = $region24
        $region23: #{tpu_custom_call.1} parent=11 // pred_region
          _
        $region24: #{tpu_custom_call.1} parent=11 // pred_fallthru
          _
        // Predicated region
        $region25: #{tpu_custom_call.1} parent=11 // pred_check
          %p202 = pneg %p126
        $region26: #{tpu_custom_call.1} parent=11 // pred_check_branch
          %204 = sbr.rel (%p202) target = $region28
        $region27: #{tpu_custom_call.1} parent=11 // pred_region
          _
        $region28: #{tpu_custom_call.1} parent=11 // pred_fallthru
          _
      $region12: #{tpu_custom_call.1} parent=5 // pred_fallthru
        _
      %p205 = scmp.lt.s32.totalorder %s16, 2
      // Predicated region
      $region29: #{tpu_custom_call.1} parent=5 // pred_check
        %p206 = pneg %p205
      $region30: #{tpu_custom_call.1} parent=5 // pred_check_branch
        %208 = sbr.rel (%p206) target = $region32
      $region31: #{tpu_custom_call.1} parent=5 // pred_region
        // Predicated region
        $region33: #{tpu_custom_call.1} parent=31 // pred_check
          %p209 = pneg %p36
        $region34: #{tpu_custom_call.1} parent=31 // pred_check_branch
          %211 = sbr.rel (%p209) target = $region36
        $region35: #{tpu_custom_call.1} parent=31 // pred_region
          %p212 = scmp.lt.s32.totalorder %s16, 1
          %s213 = scalar_select %p212, %s16, 1
          %s214 = smul.addr %s213, 8
          %s215 = scalar_lea.vmem %s0, %s214
        $region36: #{tpu_custom_call.1} parent=31 // pred_fallthru
          _
      $region32: #{tpu_custom_call.1} parent=5 // pred_fallthru
        _
      %p216 = scmp.le.s32.totalorder 1, %s16
      %p217 = scmp.lt.s32.totalorder %s16, 3
      %p218 = pnand %p216, %p217
      %p219 = pneg %p218
      // Predicated region
      $region37: #{tpu_custom_call.1} parent=5 // pred_check
        _
      $region38: #{tpu_custom_call.1} parent=5 // pred_check_branch
        %221 = sbr.rel (%p218) target = $region40
      $region39: #{tpu_custom_call.1} parent=5 // pred_region
        %s222 = ssub.s32 %s16, 1
        %p223 = scmp.lt.s32.totalorder %s21, 1
        %s224 = scalar_select %p223, %s21, 1
        %s225 = smul.addr %s224, 8
        %s226 = scalar_lea.vmem %s0, %s225
        %p227 = pneg %p42
        %p228 = pneg %p39
        %p229 = pneg %p63
        %p230 = pneg %p60
        %p231 = pneg %p84
        %p232 = pneg %p81
        %p233 = pneg %p105
        %p234 = pneg %p102
        %p235 = pneg %p126
        %p236 = pneg %p123
        %p237 = pneg %p152
        %p238 = pneg %p149
        %s239 = sand.u32 %s139, 1
        %s240 = scalar_lea.sflag [#allocation3], %s239
        %s241 = sand.u32 %s139, 1
        %s242 = smul.addr %s241, 8
        %s243 = scalar_lea.vmem [#allocation2], %s242
        %p244 = pneg %p178
        %p245 = pneg %p175
        %p246 = scmp.lt.s32.totalorder %s21, 1
        %s247 = scalar_select %p246, %s21, 1
        %s248 = smul.addr %s247, 8
        %s249 = scalar_lea.vmem %s6, %s248
        %p250 = scmp.lt.s32.totalorder %s21, 1
        %s251 = scalar_select %p250, %s21, 1
        %s252 = smul.addr %s251, 8
        %s253 = scalar_lea.vmem %s0, %s252
        %p254 = scmp.lt.s32.totalorder %s21, 1
        %s255 = scalar_select %p254, %s21, 1
        %s256 = smul.addr %s255, 8
        %s257 = scalar_lea.vmem %s6, %s256
        %v258 = vld [vmem:[%s253] sm:$0xff]
        %v259 = vld [vmem:[%s1] sm:$0xff]
        %v260 = vld [vmem:[%s1 + $0x8] sm:$0xff]
        %v261 = vld [vmem:[%s1 + $0x10] sm:$0xff]
        %v262 = vld [vmem:[%s1 + $0x18] sm:$0xff]
        %v263 = vld [vmem:[%s2] sm:$0x1]
        %v265 = vperm.slane %v263, 0
        %vm267 = vcmask 261120
        %v269 = vsel %vm267, %v258, 0
        %271 = vmatpush.msra.mxu0 0.0
        %272 = vmatpush.msra.mxu0 0.0
        %273 = vmatpush.msra.mxu0 0.0
        %274 = vmatpush.msra.mxu0 0.0
        %275 = vmatpush.msra.mxu0 0.0
        %276 = vmatpush.msra.mxu0 0.0
        %277 = vmatpush.msra.mxu0 0.0
        %278 = vmatpush.msra.mxu0 0.0
        %279 = vmatpush.msra.mxu0 0.0
        %280 = vmatpush.msra.mxu0 0.0
        %281 = vmatpush.msra.mxu0 0.0
        %282 = vmatpush.msra.mxu0 0.0
        %283 = vmatpush.msra.mxu0 %v262
        %284 = vmatpush.msra.mxu0 %v261
        %285 = vmatpush.msra.mxu0 %v260
        %286 = vmatpush.msra.mxu0 %v259
        %287 = vmatmul.f32.gmra.mxu0 %v269
        %v288 = vpop.f32.mrf.mxu0
        %v289 = vadd.f32 %v265, %v288
        %290 = vdwg.mxu0
        %v291 = vmax.f32 %v289, 0.0
        %292 = vst [vmem:[%s243] sm:$0xff] %v291
        %v293 = vld [vmem:[%s3] sm:$0xff]
        %v294 = vld [vmem:[%s3 + $0x8] sm:$0xff]
        %v295 = vld [vmem:[%s3 + $0x10] sm:$0xff]
        %v296 = vld [vmem:[%s3 + $0x18] sm:$0xff]
        %v297 = vld [vmem:[%s3 + $0x20] sm:$0xff]
        %v298 = vld [vmem:[%s3 + $0x28] sm:$0xff]
        %v299 = vld [vmem:[%s3 + $0x30] sm:$0xff]
        %v300 = vld [vmem:[%s3 + $0x38] sm:$0xff]
        %v301 = vld [vmem:[%s3 + $0x40] sm:$0xff]
        %v302 = vld [vmem:[%s3 + $0x48] sm:$0xff]
        %v303 = vld [vmem:[%s3 + $0x50] sm:$0xff]
        %v304 = vld [vmem:[%s3 + $0x58] sm:$0xff]
        %v305 = vld [vmem:[%s3 + $0x60] sm:$0xff]
        %v306 = vld [vmem:[%s3 + $0x68] sm:$0xff]
        %v307 = vld [vmem:[%s3 + $0x70] sm:$0xff]
        %v308 = vld [vmem:[%s3 + $0x78] sm:$0xff]
        %v309 = vld [vmem:[%s4] sm:$0x1]
        %v311 = vperm.slane %v309, 0
        %313 = vmatpush.msra.mxu0 %v308
        %314 = vmatpush.msra.mxu0 %v307
        %315 = vmatpush.msra.mxu0 %v306
        %316 = vmatpush.msra.mxu0 %v305
        %317 = vmatpush.msra.mxu0 %v304
        %318 = vmatpush.msra.mxu0 %v303
        %319 = vmatpush.msra.mxu0 %v302
        %320 = vmatpush.msra.mxu0 %v301
        %321 = vmatpush.msra.mxu0 %v300
        %322 = vmatpush.msra.mxu0 %v299
        %323 = vmatpush.msra.mxu0 %v298
        %324 = vmatpush.msra.mxu0 %v297
        %325 = vmatpush.msra.mxu0 %v296
        %326 = vmatpush.msra.mxu0 %v295
        %327 = vmatpush.msra.mxu0 %v294
        %328 = vmatpush.msra.mxu0 %v293
        %329 = vmatmul.f32.gmra.mxu0 %v291
        %v330 = vpop.f32.mrf.mxu0
        %v331 = vadd.f32 %v311, %v330
        %332 = vdwg.mxu0
        %v333 = vsub.f32 0.0, %v331
        %v334 = vmul.f32 %v333, 1.442695
        %v335 = vpow.pop %v334
        %v336 = vadd.f32 %v335, 1.0
        %v337 = vrcp.pop %v336
        %v338 = vmul.f32 %v336, %v337
        %v339 = vsub.f32 1.0, %v338
        %v340 = vmul.f32 %v337, %v339
        %v341 = vadd.f32 %v337, %v340
        %vm342 = vweird.f32 %v336
        %vm343 = vweird.f32 %v337
        %vm344 = vmor %vm342, %vm343
        %v345 = vsel %vm344, %v337, %v341
        %v346 = vand.u32 2147483647, %v336
        %vm347 = vcmp.eq.f32.partialorder %v346, 8.507059e+37
        %v348 = vand.u32 %v336, 2147483648
        %v349 = vor.u32 1.1754944e-38, %v348
        %v350 = vsel %vm347, %v349, %v345
        %v351 = vmul.f32 1.0, %v350
        %vm352 = vcmask 15360
        %353 = vst.msk [vmem:[%s257] sm:$0xff] %vm352, %v351
        %s354 = sand.u32 %s139, 1
        %s355 = scalar_lea.sflag [#allocation3], %s354
        %s356 = sand.u32 %s139, 1
        %s357 = smul.addr %s356, 8
        %s358 = scalar_lea.vmem [#allocation2], %s357
        %p359 = scmp.lt.s32.totalorder %s21, 1
        %s360 = scalar_select %p359, %s21, 1
        %s361 = smul.addr %s360, 8
        %s362 = scalar_lea.vmem %s6, %s361
        // Predicated region
        $region41: #{tpu_custom_call.1} parent=39 // pred_check
          %p363 = pneg %p149
        $region42: #{tpu_custom_call.1} parent=39 // pred_check_branch
          %365 = sbr.rel (%p363) target = $region44
        $region43: #{tpu_custom_call.1} parent=39 // pred_region
          %367 = vsyncadd %s355, 0
          %s368 = smul.addr %s21, 8
          %s369 = scalar_lea.hbm %s5, %s368
          %s371 = sshll.u32 %s358, 4
          %s372 = int_to_ptr.vmem [resolvable:$true] %s371
          %s373 = sshll.u32 %s369, 4
          %s374 = int_to_ptr.hbm [resolvable:$true] %s373
          %376 = dma.vmem_to_hbm [thread:$0]  %s372, 128, %s374, %s355
        $region44: #{tpu_custom_call.1} parent=39 // pred_fallthru
          _
        // Predicated region
        $region45: #{tpu_custom_call.1} parent=39 // pred_check
          %p377 = pneg %p175
        $region46: #{tpu_custom_call.1} parent=39 // pred_check_branch
          %379 = sbr.rel (%p377) target = $region48
        $region47: #{tpu_custom_call.1} parent=39 // pred_region
          _
        $region48: #{tpu_custom_call.1} parent=39 // pred_fallthru
          _
      $region40: #{tpu_custom_call.1} parent=5 // pred_fallthru
        _
      %p380 = scmp.le.s32.totalorder 2, %s16
      // Predicated region
      $region49: #{tpu_custom_call.1} parent=5 // pred_check
        %p381 = pneg %p380
      $region50: #{tpu_custom_call.1} parent=5 // pred_check_branch
        %383 = sbr.rel (%p381) target = $region52
      $region51: #{tpu_custom_call.1} parent=5 // pred_region
        %s384 = ssub.s32 %s16, 2
        // Predicated region
        $region53: #{tpu_custom_call.1} parent=51 // pred_check
          %p385 = pneg %p155
        $region54: #{tpu_custom_call.1} parent=51 // pred_check_branch
          %387 = sbr.rel (%p385) target = $region56
        $region55: #{tpu_custom_call.1} parent=51 // pred_region
          %s388 = sand.u32 %s140, 1
          %s389 = scalar_lea.sflag [#allocation3], %s388
          %s390 = sand.u32 %s140, 1
          %s391 = smul.addr %s390, 8
          %s392 = scalar_lea.vmem [#allocation2], %s391
          %394 = dma.done %s389, 128
        $region56: #{tpu_custom_call.1} parent=51 // pred_fallthru
          _
        // Predicated region
        $region57: #{tpu_custom_call.1} parent=51 // pred_check
          %p395 = pneg %p181
        $region58: #{tpu_custom_call.1} parent=51 // pred_check_branch
          %397 = sbr.rel (%p395) target = $region60
        $region59: #{tpu_custom_call.1} parent=51 // pred_region
          %p398 = scmp.lt.s32.totalorder %s22, 1
          %s399 = scalar_select %p398, %s22, 1
          %s400 = smul.addr %s399, 8
          %s401 = scalar_lea.vmem %s6, %s400
        $region60: #{tpu_custom_call.1} parent=51 // pred_fallthru
          _
      $region52: #{tpu_custom_call.1} parent=5 // pred_fallthru
        _
    $region6: #{tpu_custom_call.1} parent=1 // loop_footer
      %s20 = sadd.s32 1, %s16
    $region7: #{tpu_custom_call.1} parent=1 // loop_footer_branch
      %15 = sbr.rel target = $region3
    $region8: #{tpu_custom_call.1} parent=1 // loop_exit
      _
    %402 = vsyncpa [#allocation3], 1
    %s403 = scalar_lea.sflag [#allocation3], 1
    %404 = vsyncpa %s403, 1

</llo_original>
